<compile_context>
chip_gen: v5e
topology: v5e:2x2
jax: 0.10.0
libtpu: 0.0.40
codegen_flags: <defaults>
</compile_context>

<pallas_src>
import jax
import jax.numpy as jnp
from jax.experimental import pallas as pl
from jax.experimental.pallas import tpu as pltpu

FCNUM = 512   # default fcnum of VOFlowRes
H1 = 256      # fused layer-1 width  (128 trans + 128 rot)
H2 = 64       # fused layer-2 width  (32 trans + 32 rot)
OUT = 6       # fused output width   (3 trans + 3 rot)


def _voflow_kernel(x_ref, w1_ref, b1_ref, w2_ref, b2_ref, w3_ref, b3_ref, out_ref):
    """Fused two-head MLP: 3 bf16 matmuls with f32 accumulation/bias/ReLU."""
    x = x_ref[...]  # (TM, 512) bf16

    h1 = jnp.dot(x, w1_ref[...], preferred_element_type=jnp.float32) + b1_ref[...]
    h1 = jnp.maximum(h1, 0.0).astype(jnp.bfloat16)

    h2 = jnp.dot(h1, w2_ref[...], preferred_element_type=jnp.float32) + b2_ref[...]
    h2 = jnp.maximum(h2, 0.0).astype(jnp.bfloat16)

    y = jnp.dot(h2, w3_ref[...], preferred_element_type=jnp.float32) + b3_ref[...]
    out_ref[...] = y  # single store of the (TM, 6) result (trans | rot)


def voflow_res_forward(x, fused_params, *, tm=256):
    """x: (B, ...) -> flattened to (B, FCNUM); returns (B, 6) float32."""
    b = x.shape[0]
    x2d = x.reshape(b, -1)
    assert x2d.shape[1] == FCNUM, f"expected {FCNUM} features, got {x2d.shape[1]}"
    x_bf = x2d.astype(jnp.bfloat16)

    # Batch tiling: small batches run as one full block; large batches are
    # tiled at tm rows (multiple of 8) and padded up to a whole number of tiles.
    if b <= tm:
        block_b, b_pad = b, b
    else:
        block_b = tm
        b_pad = ((b + tm - 1) // tm) * tm
        if b_pad != b:
            x_bf = jnp.pad(x_bf, ((0, b_pad - b), (0, 0)))
    grid = (b_pad // block_b,)

    w1, b1 = fused_params["w1"], fused_params["b1"]
    w2, b2 = fused_params["w2"], fused_params["b2"]
    w3, b3 = fused_params["w3"], fused_params["b3"]

    flops = 2 * b_pad * (FCNUM * H1 + H1 * H2 + H2 * OUT)
    bytes_accessed = (
        x_bf.size * 2
        + (w1.size + w2.size + w3.size) * 2          # bf16 weights
        + (b1.size + b2.size + b3.size) * 4          # f32 biases
        + b_pad * OUT * 4                            # f32 output
    )
    cost = pl.CostEstimate(flops=flops, transcendentals=0,
                           bytes_accessed=bytes_accessed)

    in_specs = [
        pl.BlockSpec((block_b, FCNUM), lambda i: (i, 0)),   # x tile streams
        pl.BlockSpec((FCNUM, H1), lambda i: (0, 0)),        # weights resident
        pl.BlockSpec((1, H1), lambda i: (0, 0)),
        pl.BlockSpec((H1, H2), lambda i: (0, 0)),
        pl.BlockSpec((1, H2), lambda i: (0, 0)),
        pl.BlockSpec((H2, OUT), lambda i: (0, 0)),
        pl.BlockSpec((1, OUT), lambda i: (0, 0)),
    ]
    out_specs = pl.BlockSpec((block_b, OUT), lambda i: (i, 0))

    out = pl.pallas_call(
        _voflow_kernel,
        out_shape=jax.ShapeDtypeStruct((b_pad, OUT), jnp.float32),
        grid=grid,
        in_specs=in_specs,
        out_specs=out_specs,
        compiler_params=pltpu.CompilerParams(
            dimension_semantics=("parallel",)),
        cost_estimate=cost,
    )(x_bf, w1, b1, w2, b2, w3, b3)

    return out[:b]


def init_params(key):
    """Deterministic synthetic init matching nn.Linear shapes of VOFlowRes (f32)."""
    def linear_params(key, fan_in, fan_out):
        kw, kb = jax.random.split(key)
        bound = 1.0 / jnp.sqrt(jnp.float32(fan_in))
        # weight stored as (in, out); bias stored as (1, out) for broadcasting
        w = jax.random.uniform(kw, (fan_in, fan_out), jnp.float32, -bound, bound)
        b = jax.random.uniform(kb, (1, fan_out), jnp.float32, -bound, bound)
        return w, b

    keys = jax.random.split(key, 6)
    w1t, b1t = linear_params(keys[0], FCNUM, 128)
    w2t, b2t = linear_params(keys[1], 128, 32)
    w3t, b3t = linear_params(keys[2], 32, 3)
    w1r, b1r = linear_params(keys[3], FCNUM, 128)
    w2r, b2r = linear_params(keys[4], 128, 32)
    w3r, b3r = linear_params(keys[5], 32, 3)
    return dict(
        w1t=w1t, b1t=b1t, w2t=w2t, b2t=b2t, w3t=w3t, b3t=b3t,
        w1r=w1r, b1r=b1r, w2r=w2r, b2r=b2r, w3r=w3r, b3r=b3r,
    )


def fuse_params(params):
    """Fuse the two heads: concat layer-1, block-diag layers 2/3; weights -> bf16."""
    w1 = jnp.concatenate([params["w1t"], params["w1r"]], axis=1)          # (512, 256)
    b1 = jnp.concatenate([params["b1t"], params["b1r"]], axis=1)          # (1, 256)

    w2 = jnp.zeros((H1, H2), jnp.float32)
    w2 = w2.at[:128, :32].set(params["w2t"]).at[128:, 32:].set(params["w2r"])
    b2 = jnp.concatenate([params["b2t"], params["b2r"]], axis=1)          # (1, 64)

    w3 = jnp.zeros((H2, OUT), jnp.float32)
    w3 = w3.at[:32, :3].set(params["w3t"]).at[32:, 3:].set(params["w3r"])
    b3 = jnp.concatenate([params["b3t"], params["b3r"]], axis=1)          # (1, 6)

    return dict(
        w1=w1.astype(jnp.bfloat16), b1=b1,
        w2=w2.astype(jnp.bfloat16), b2=b2,
        w3=w3.astype(jnp.bfloat16), b3=b3,
    )


def voflow_res_reference(x, params):
    """Pure-JAX f32 reference (unfused, matches the PyTorch module exactly)."""
    b = x.shape[0]
    h = x.reshape(b, -1).astype(jnp.float32)

    def head(h, w1, b1, w2, b2, w3, b3):
        h1 = jnp.maximum(h @ w1 + b1, 0.0)
        h2 = jnp.maximum(h1 @ w2 + b2, 0.0)
        return h2 @ w3 + b3

    yt = head(h, params["w1t"], params["b1t"], params["w2t"], params["b2t"],
              params["w3t"], params["b3t"])
    yr = head(h, params["w1r"], params["b1r"], params["w2r"], params["b2r"],
              params["w3r"], params["b3r"])
    return jnp.concatenate([yt, yr], axis=1)


if __name__ == "__main__":
    key = jax.random.PRNGKey(0)
    kx, kp = jax.random.split(key)

    # Small input consistent with the module: batch=2, flattened feature = fcnum=512.
    # (a (2, 2, 16, 16) feature map flattens to (2, 512))
    x = jax.random.normal(kx, (2, 2, 16, 16), jnp.float32)
    params = init_params(kp)
    fused = fuse_params(params)

    out = voflow_res_forward(x, fused)
    out = jax.block_until_ready(out)

    ref = voflow_res_reference(x, params)
    assert out.shape == (2, 6), out.shape
    # bf16 weights/activations in the matmuls -> loosen tolerance vs f32 reference.
    assert jnp.allclose(out, ref, atol=2e-2, rtol=2e-2), (
        "mismatch vs reference: max abs err "
        f"{float(jnp.max(jnp.abs(out - ref)))}"
    )
    print("KERNEL_OK")
</pallas_src>

<mosaic_0001>
module attributes {stable_mosaic.version = 11 : i64} {
  func.func @_voflow_kernel(%arg0: i32, %arg1: memref<2x512xbf16, #tpu.memory_space<vmem>>, %arg2: memref<512x256xbf16, #tpu.memory_space<vmem>>, %arg3: memref<1x256xf32, #tpu.memory_space<vmem>>, %arg4: memref<256x64xbf16, #tpu.memory_space<vmem>>, %arg5: memref<1x64xf32, #tpu.memory_space<vmem>>, %arg6: memref<64x6xbf16, #tpu.memory_space<vmem>>, %arg7: memref<1x6xf32, #tpu.memory_space<vmem>>, %arg8: memref<2x6xf32, #tpu.memory_space<vmem>>) attributes {dimension_semantics = [#tpu.dimension_semantics<parallel>], iteration_bounds = array<i64: 1>, scalar_prefetch = 0 : i64, scratch_operands = 0 : i64, tpu.core_type = #tpu.core_type<tc>, window_params = [{transform_indices = @transform_0, window_bounds = array<i64: 2, 512>}, {pipeline_mode = #tpu.pipeline_mode<synchronous>, transform_indices = @transform_1, window_bounds = array<i64: 512, 256>}, {pipeline_mode = #tpu.pipeline_mode<synchronous>, transform_indices = @transform_2, window_bounds = array<i64: 1, 256>}, {pipeline_mode = #tpu.pipeline_mode<synchronous>, transform_indices = @transform_3, window_bounds = array<i64: 256, 64>}, {pipeline_mode = #tpu.pipeline_mode<synchronous>, transform_indices = @transform_4, window_bounds = array<i64: 1, 64>}, {pipeline_mode = #tpu.pipeline_mode<synchronous>, transform_indices = @transform_5, window_bounds = array<i64: 64, 6>}, {pipeline_mode = #tpu.pipeline_mode<synchronous>, transform_indices = @transform_6, window_bounds = array<i64: 1, 6>}, {transform_indices = @transform_7, window_bounds = array<i64: 2, 6>}]} {
    %c0 = arith.constant 0 : index
    %c0_0 = arith.constant 0 : index
    %0 = vector.load %arg1[%c0, %c0_0] : memref<2x512xbf16, #tpu.memory_space<vmem>>, vector<2x512xbf16>
    %c0_1 = arith.constant 0 : index
    %c0_2 = arith.constant 0 : index
    %1 = vector.load %arg2[%c0_1, %c0_2] : memref<512x256xbf16, #tpu.memory_space<vmem>>, vector<512x256xbf16>
    %cst = arith.constant dense<0.000000e+00> : vector<2x256xf32>
    %2 = tpu.matmul %0, %1, %cst {dimension_numbers = #tpu.dot_dimension_numbers<[1], [0], [0], [1], [0, 0, 1, 1], [], []>} : vector<2x512xbf16>, vector<512x256xbf16>, vector<2x256xf32> -> vector<2x256xf32>
    %c0_3 = arith.constant 0 : index
    %c0_4 = arith.constant 0 : index
    %3 = vector.load %arg3[%c0_3, %c0_4] : memref<1x256xf32, #tpu.memory_space<vmem>>, vector<1x256xf32>
    %4 = vector.broadcast %3 : vector<1x256xf32> to vector<2x256xf32>
    %5 = arith.addf %2, %4 : vector<2x256xf32>
    %cst_5 = arith.constant 0.000000e+00 : f32
    %6 = vector.broadcast %cst_5 : f32 to vector<2x256xf32>
    %7 = arith.maximumf %5, %6 : vector<2x256xf32>
    %8 = arith.truncf %7 : vector<2x256xf32> to vector<2x256xbf16>
    %c0_6 = arith.constant 0 : index
    %c0_7 = arith.constant 0 : index
    %9 = vector.load %arg4[%c0_6, %c0_7] : memref<256x64xbf16, #tpu.memory_space<vmem>>, vector<256x64xbf16>
    %cst_8 = arith.constant dense<0.000000e+00> : vector<2x64xf32>
    %10 = tpu.matmul %8, %9, %cst_8 {dimension_numbers = #tpu.dot_dimension_numbers<[1], [0], [0], [1], [0, 0, 1, 1], [], []>} : vector<2x256xbf16>, vector<256x64xbf16>, vector<2x64xf32> -> vector<2x64xf32>
    %c0_9 = arith.constant 0 : index
    %c0_10 = arith.constant 0 : index
    %11 = vector.load %arg5[%c0_9, %c0_10] : memref<1x64xf32, #tpu.memory_space<vmem>>, vector<1x64xf32>
    %12 = vector.broadcast %11 : vector<1x64xf32> to vector<2x64xf32>
    %13 = arith.addf %10, %12 : vector<2x64xf32>
    %cst_11 = arith.constant 0.000000e+00 : f32
    %14 = vector.broadcast %cst_11 : f32 to vector<2x64xf32>
    %15 = arith.maximumf %13, %14 : vector<2x64xf32>
    %16 = arith.truncf %15 : vector<2x64xf32> to vector<2x64xbf16>
    %c0_12 = arith.constant 0 : index
    %c0_13 = arith.constant 0 : index
    %17 = vector.load %arg6[%c0_12, %c0_13] : memref<64x6xbf16, #tpu.memory_space<vmem>>, vector<64x6xbf16>
    %cst_14 = arith.constant dense<0.000000e+00> : vector<2x6xf32>
    %18 = tpu.matmul %16, %17, %cst_14 {dimension_numbers = #tpu.dot_dimension_numbers<[1], [0], [0], [1], [0, 0, 1, 1], [], []>} : vector<2x64xbf16>, vector<64x6xbf16>, vector<2x6xf32> -> vector<2x6xf32>
    %c0_15 = arith.constant 0 : index
    %c0_16 = arith.constant 0 : index
    %19 = vector.load %arg7[%c0_15, %c0_16] : memref<1x6xf32, #tpu.memory_space<vmem>>, vector<1x6xf32>
    %20 = vector.broadcast %19 : vector<1x6xf32> to vector<2x6xf32>
    %21 = arith.addf %18, %20 : vector<2x6xf32>
    %c0_17 = arith.constant 0 : index
    %c0_18 = arith.constant 0 : index
    %22 = vector.load %arg8[%c0_17, %c0_18] : memref<2x6xf32, #tpu.memory_space<vmem>>, vector<2x6xf32>
    tpu.vector_store %arg8[%c0_17, %c0_18], %21 {strides = array<i32>} : memref<2x6xf32, #tpu.memory_space<vmem>>, vector<2x6xf32>,
    return
  }
  func.func @transform_0(%arg0: i32) -> (i32, i32) {
    %c0_i32 = arith.constant 0 : i32
    %c0_i32_0 = arith.constant 0 : i32
    return %arg0, %c0_i32 : i32, i32
  }
  func.func @transform_1(%arg0: i32) -> (i32, i32) {
    %c0_i32 = arith.constant 0 : i32
    %c0_i32_0 = arith.constant 0 : i32
    %c0_i32_1 = arith.constant 0 : i32
    return %c0_i32, %c0_i32_0 : i32, i32
  }
  func.func @transform_2(%arg0: i32) -> (i32, i32) {
    %c0_i32 = arith.constant 0 : i32
    %c0_i32_0 = arith.constant 0 : i32
    %c0_i32_1 = arith.constant 0 : i32
    return %c0_i32, %c0_i32_0 : i32, i32
  }
  func.func @transform_3(%arg0: i32) -> (i32, i32) {
    %c0_i32 = arith.constant 0 : i32
    %c0_i32_0 = arith.constant 0 : i32
    %c0_i32_1 = arith.constant 0 : i32
    return %c0_i32, %c0_i32_0 : i32, i32
  }
  func.func @transform_4(%arg0: i32) -> (i32, i32) {
    %c0_i32 = arith.constant 0 : i32
    %c0_i32_0 = arith.constant 0 : i32
    %c0_i32_1 = arith.constant 0 : i32
    return %c0_i32, %c0_i32_0 : i32, i32
  }
  func.func @transform_5(%arg0: i32) -> (i32, i32) {
    %c0_i32 = arith.constant 0 : i32
    %c0_i32_0 = arith.constant 0 : i32
    %c0_i32_1 = arith.constant 0 : i32
    return %c0_i32, %c0_i32_0 : i32, i32
  }
  func.func @transform_6(%arg0: i32) -> (i32, i32) {
    %c0_i32 = arith.constant 0 : i32
    %c0_i32_0 = arith.constant 0 : i32
    %c0_i32_1 = arith.constant 0 : i32
    return %c0_i32, %c0_i32_0 : i32, i32
  }
  func.func @transform_7(%arg0: i32) -> (i32, i32) {
    %c0_i32 = arith.constant 0 : i32
    %c0_i32_0 = arith.constant 0 : i32
    return %arg0, %c0_i32 : i32, i32
  }
}

</mosaic_0001>

<llo_original>
// kernel: tpu_custom_call.1
$region0: #{tpu_custom_call.1}
  #allocation0 [shape = 'u32[]', space=smem, size = 0x4, offset = 0x4, fixed_abs, tag = 'smem constant byte address 0x4 - core index']
  #allocation1 [shape = 'u32[72,128]{1,0:T(1,128)}', space=vmem, size = 0x9000, scoped, tag = 'internal scratch']
  %s0 = inlined_call_operand.vmem [shape: bf16[2,512], index: 0, kind: input, shape index: {}]
  %s1 = inlined_call_operand.hbm [shape: bf16[512,256], index: 1, kind: input, shape index: {}]
  %s2 = inlined_call_operand.vmem [shape: f32[1,256], index: 2, kind: input, shape index: {}]
  %s3 = inlined_call_operand.vmem [shape: bf16[256,64], index: 3, kind: input, shape index: {}]
  %s4 = inlined_call_operand.vmem [shape: f32[1,64], index: 4, kind: input, shape index: {}]
  %s5 = inlined_call_operand.vmem [shape: bf16[64,6], index: 5, kind: input, shape index: {}]
  %s6 = inlined_call_operand.vmem [shape: f32[1,6], index: 6, kind: input, shape index: {}]
  %s7 = inlined_call_operand.hbm [shape: f32[2,6], index: 7, kind: output, shape index: {}]
  %s8 = sld [smem:[#allocation0]]
  $region42: #{tpu_custom_call.1} parent=0
    _
  %s10 = ssub.s32 1, %s8
  %s11 = scalar_select 0, %s10, %s8
  $region1: #{tpu_custom_call.1} parent=0
    #allocation2 [shape = 'u8[262144]{0}', space=vmem, size = 0x40000, scoped, tag = 'input window, operand 1, single buffered']
    #allocation3 [shape = 's32[1]{0}', space=sflag, size = 0x4, scoped, tag = 'scoped memory for tpu_custom_call.1']
    #allocation4 [shape = 's32[1]{0}', space=sflag, size = 0x4, scoped, tag = 'scoped memory for tpu_custom_call.1']
    #allocation5 [shape = 'u8[1024]{0}', space=vmem, size = 0x400, scoped, tag = 'output window, operand 0, single buffered']
    %12 = vsyncpa [#allocation3], 0
    %13 = vsyncpa [#allocation4], 0
    // Predicated region
    $region2: #{tpu_custom_call.1} parent=1 // pred_check
      _
    $region3: #{tpu_custom_call.1} parent=1 // pred_check_branch
      %15 = sbr.rel (0) target = $region5
    $region4: #{tpu_custom_call.1} parent=1 // pred_region
      _
    $region5: #{tpu_custom_call.1} parent=1 // pred_fallthru
      _
    // Predicated region
    $region6: #{tpu_custom_call.1} parent=1 // pred_check
      _
    $region7: #{tpu_custom_call.1} parent=1 // pred_check_branch
      %17 = sbr.rel (0) target = $region9
    $region8: #{tpu_custom_call.1} parent=1 // pred_region
      %19 = vsyncadd [#allocation3], 0
      %s20 = sshll.u32 %s1, 4
      %s21 = int_to_ptr.hbm [resolvable:$true] %s20
      %s22 = sshll.u32 [#allocation2], 4
      %s23 = int_to_ptr.vmem [resolvable:$true] %s22
      %28 = dma.hbm_to_vmem [thread:$0]  %s21, 8192, %s23, [#allocation3], 128, 128, 8
    $region9: #{tpu_custom_call.1} parent=1 // pred_fallthru
      _
    // Predicated region
    $region10: #{tpu_custom_call.1} parent=1 // pred_check
      _
    $region11: #{tpu_custom_call.1} parent=1 // pred_check_branch
      %30 = sbr.rel (0) target = $region13
    $region12: #{tpu_custom_call.1} parent=1 // pred_region
      _
    $region13: #{tpu_custom_call.1} parent=1 // pred_fallthru
      _
    // Predicated region
    $region14: #{tpu_custom_call.1} parent=1 // pred_check
      _
    $region15: #{tpu_custom_call.1} parent=1 // pred_check_branch
      %32 = sbr.rel (0) target = $region17
    $region16: #{tpu_custom_call.1} parent=1 // pred_region
      _
    $region17: #{tpu_custom_call.1} parent=1 // pred_fallthru
      _
    // Predicated region
    $region18: #{tpu_custom_call.1} parent=1 // pred_check
      _
    $region19: #{tpu_custom_call.1} parent=1 // pred_check_branch
      %34 = sbr.rel (0) target = $region21
    $region20: #{tpu_custom_call.1} parent=1 // pred_region
      _
    $region21: #{tpu_custom_call.1} parent=1 // pred_fallthru
      _
    // Predicated region
    $region22: #{tpu_custom_call.1} parent=1 // pred_check
      _
    $region23: #{tpu_custom_call.1} parent=1 // pred_check_branch
      %36 = sbr.rel (0) target = $region25
    $region24: #{tpu_custom_call.1} parent=1 // pred_region
      _
    $region25: #{tpu_custom_call.1} parent=1 // pred_fallthru
      _
    // Predicated region
    $region26: #{tpu_custom_call.1} parent=1 // pred_check
      _
    $region27: #{tpu_custom_call.1} parent=1 // pred_check_branch
      %38 = sbr.rel (0) target = $region29
    $region28: #{tpu_custom_call.1} parent=1 // pred_region
      _
    $region29: #{tpu_custom_call.1} parent=1 // pred_fallthru
      _
    // Predicated region
    $region30: #{tpu_custom_call.1} parent=1 // pred_check
      _
    $region31: #{tpu_custom_call.1} parent=1 // pred_check_branch
      %40 = sbr.rel (0) target = $region33
    $region32: #{tpu_custom_call.1} parent=1 // pred_region
      %42 = dma.done [#allocation3], 8192
    $region33: #{tpu_custom_call.1} parent=1 // pred_fallthru
      _
    %v44 = vld [vmem:[%s0] sm:$0xf]
    %v45 = vld [vmem:[#allocation2] sm:$0xff]
    %v46 = vld [vmem:[#allocation2 + $0x8] sm:$0xff]
    %v47 = vld [vmem:[#allocation2 + $0x10] sm:$0xff]
    %v48 = vld [vmem:[#allocation2 + $0x18] sm:$0xff]
    %v49 = vld [vmem:[#allocation2 + $0x20] sm:$0xff]
    %v50 = vld [vmem:[#allocation2 + $0x28] sm:$0xff]
    %v51 = vld [vmem:[#allocation2 + $0x30] sm:$0xff]
    %v52 = vld [vmem:[#allocation2 + $0x38] sm:$0xff]
    %v53 = vld [vmem:[#allocation2 + $0x40] sm:$0xff]
    %v54 = vld [vmem:[#allocation2 + $0x48] sm:$0xff]
    %v55 = vld [vmem:[#allocation2 + $0x50] sm:$0xff]
    %v56 = vld [vmem:[#allocation2 + $0x58] sm:$0xff]
    %v57 = vld [vmem:[#allocation2 + $0x60] sm:$0xff]
    %v58 = vld [vmem:[#allocation2 + $0x68] sm:$0xff]
    %v59 = vld [vmem:[#allocation2 + $0x70] sm:$0xff]
    %v60 = vld [vmem:[#allocation2 + $0x78] sm:$0xff]
    %v61 = vld [vmem:[#allocation2 + $0x80] sm:$0xff]
    %v62 = vld [vmem:[#allocation2 + $0x88] sm:$0xff]
    %v63 = vld [vmem:[#allocation2 + $0x90] sm:$0xff]
    %v64 = vld [vmem:[#allocation2 + $0x98] sm:$0xff]
    %v65 = vld [vmem:[#allocation2 + $0xa0] sm:$0xff]
    %v66 = vld [vmem:[#allocation2 + $0xa8] sm:$0xff]
    %v67 = vld [vmem:[#allocation2 + $0xb0] sm:$0xff]
    %v68 = vld [vmem:[#allocation2 + $0xb8] sm:$0xff]
    %v69 = vld [vmem:[#allocation2 + $0xc0] sm:$0xff]
    %v70 = vld [vmem:[#allocation2 + $0xc8] sm:$0xff]
    %v71 = vld [vmem:[#allocation2 + $0xd0] sm:$0xff]
    %v72 = vld [vmem:[#allocation2 + $0xd8] sm:$0xff]
    %v73 = vld [vmem:[#allocation2 + $0xe0] sm:$0xff]
    %v74 = vld [vmem:[#allocation2 + $0xe8] sm:$0xff]
    %v75 = vld [vmem:[#allocation2 + $0xf0] sm:$0xff]
    %v76 = vld [vmem:[#allocation2 + $0xf8] sm:$0xff]
    %v77 = vld [vmem:[#allocation2 + $0x100] sm:$0xff]
    %v78 = vld [vmem:[#allocation2 + $0x108] sm:$0xff]
    %v79 = vld [vmem:[#allocation2 + $0x110] sm:$0xff]
    %v80 = vld [vmem:[#allocation2 + $0x118] sm:$0xff]
    %v81 = vld [vmem:[#allocation2 + $0x120] sm:$0xff]
    %v82 = vld [vmem:[#allocation2 + $0x128] sm:$0xff]
    %v83 = vld [vmem:[#allocation2 + $0x130] sm:$0xff]
    %v84 = vld [vmem:[#allocation2 + $0x138] sm:$0xff]
    %v85 = vld [vmem:[#allocation2 + $0x140] sm:$0xff]
    %v86 = vld [vmem:[#allocation2 + $0x148] sm:$0xff]
    %v87 = vld [vmem:[#allocation2 + $0x150] sm:$0xff]
    %v88 = vld [vmem:[#allocation2 + $0x158] sm:$0xff]
    %v89 = vld [vmem:[#allocation2 + $0x160] sm:$0xff]
    %v90 = vld [vmem:[#allocation2 + $0x168] sm:$0xff]
    %v91 = vld [vmem:[#allocation2 + $0x170] sm:$0xff]
    %v92 = vld [vmem:[#allocation2 + $0x178] sm:$0xff]
    %v93 = vld [vmem:[#allocation2 + $0x180] sm:$0xff]
    %v94 = vld [vmem:[#allocation2 + $0x188] sm:$0xff]
    %v95 = vld [vmem:[#allocation2 + $0x190] sm:$0xff]
    %v96 = vld [vmem:[#allocation2 + $0x198] sm:$0xff]
    %v97 = vld [vmem:[#allocation2 + $0x1a0] sm:$0xff]
    %v98 = vld [vmem:[#allocation2 + $0x1a8] sm:$0xff]
    %v99 = vld [vmem:[#allocation2 + $0x1b0] sm:$0xff]
    %v100 = vld [vmem:[#allocation2 + $0x1b8] sm:$0xff]
    %v101 = vld [vmem:[#allocation2 + $0x1c0] sm:$0xff]
    %v102 = vld [vmem:[#allocation2 + $0x1c8] sm:$0xff]
    %v103 = vld [vmem:[#allocation2 + $0x1d0] sm:$0xff]
    %v104 = vld [vmem:[#allocation2 + $0x1d8] sm:$0xff]
    %v105 = vld [vmem:[#allocation2 + $0x1e0] sm:$0xff]
    %v106 = vld [vmem:[#allocation2 + $0x1e8] sm:$0xff]
    %v107 = vld [vmem:[#allocation2 + $0x1f0] sm:$0xff]
    %v108 = vld [vmem:[#allocation2 + $0x1f8] sm:$0xff]
    %v109 = vld [vmem:[%s2] sm:$0x3]
    %v111 = vperm.slane %v109, 0
    %v112 = vperm.slane %v109, 1
    %116 = vst [vmem:[#allocation1] ss:$9 sm:$0xff] %v44
    %v117 = vld [vmem:[#allocation1] sm:$0xff]
    %v118 = vld [vmem:[#allocation1 + $0x9] sm:$0xff]
    %v119 = vld [vmem:[#allocation1 + $0x12] sm:$0xff]
    %v120 = vld [vmem:[#allocation1 + $0x1b] sm:$0xff]
    %v189 = vunpack.c.l.b16 %v45
    %v190 = vunpack.c.h.b16 %v45
    %v191 = vunpack.c.l.b16 %v46
    %v192 = vunpack.c.h.b16 %v46
    %v193 = vunpack.c.l.b16 %v47
    %v194 = vunpack.c.h.b16 %v47
    %v195 = vunpack.c.l.b16 %v48
    %v196 = vunpack.c.h.b16 %v48
    %v197 = vunpack.c.l.b16 %v49
    %v198 = vunpack.c.h.b16 %v49
    %v199 = vunpack.c.l.b16 %v50
    %v200 = vunpack.c.h.b16 %v50
    %v201 = vunpack.c.l.b16 %v51
    %v202 = vunpack.c.h.b16 %v51
    %v203 = vunpack.c.l.b16 %v52
    %v204 = vunpack.c.h.b16 %v52
    %v205 = vunpack.c.l.b16 %v53
    %v206 = vunpack.c.h.b16 %v53
    %v207 = vunpack.c.l.b16 %v54
    %v208 = vunpack.c.h.b16 %v54
    %v209 = vunpack.c.l.b16 %v55
    %v210 = vunpack.c.h.b16 %v55
    %v211 = vunpack.c.l.b16 %v56
    %v212 = vunpack.c.h.b16 %v56
    %v213 = vunpack.c.l.b16 %v57
    %v214 = vunpack.c.h.b16 %v57
    %v215 = vunpack.c.l.b16 %v58
    %v216 = vunpack.c.h.b16 %v58
    %v217 = vunpack.c.l.b16 %v59
    %v218 = vunpack.c.h.b16 %v59
    %v219 = vunpack.c.l.b16 %v60
    %v220 = vunpack.c.h.b16 %v60
    %v221 = vunpack.c.l.b16 %v61
    %v222 = vunpack.c.h.b16 %v61
    %v223 = vunpack.c.l.b16 %v62
    %v224 = vunpack.c.h.b16 %v62
    %v225 = vunpack.c.l.b16 %v63
    %v226 = vunpack.c.h.b16 %v63
    %v227 = vunpack.c.l.b16 %v64
    %v228 = vunpack.c.h.b16 %v64
    %v229 = vunpack.c.l.b16 %v65
    %v230 = vunpack.c.h.b16 %v65
    %v231 = vunpack.c.l.b16 %v66
    %v232 = vunpack.c.h.b16 %v66
    %v233 = vunpack.c.l.b16 %v67
    %v234 = vunpack.c.h.b16 %v67
    %v235 = vunpack.c.l.b16 %v68
    %v236 = vunpack.c.h.b16 %v68
    %v237 = vunpack.c.l.b16 %v69
    %v238 = vunpack.c.h.b16 %v69
    %v239 = vunpack.c.l.b16 %v70
    %v240 = vunpack.c.h.b16 %v70
    %v241 = vunpack.c.l.b16 %v71
    %v242 = vunpack.c.h.b16 %v71
    %v243 = vunpack.c.l.b16 %v72
    %v244 = vunpack.c.h.b16 %v72
    %v245 = vunpack.c.l.b16 %v73
    %v246 = vunpack.c.h.b16 %v73
    %v247 = vunpack.c.l.b16 %v74
    %v248 = vunpack.c.h.b16 %v74
    %v249 = vunpack.c.l.b16 %v75
    %v250 = vunpack.c.h.b16 %v75
    %v251 = vunpack.c.l.b16 %v76
    %v252 = vunpack.c.h.b16 %v76
    %v253 = vunpack.c.l.b16 %v77
    %v254 = vunpack.c.h.b16 %v77
    %v255 = vunpack.c.l.b16 %v78
    %v256 = vunpack.c.h.b16 %v78
    %v257 = vunpack.c.l.b16 %v79
    %v258 = vunpack.c.h.b16 %v79
    %v259 = vunpack.c.l.b16 %v80
    %v260 = vunpack.c.h.b16 %v80
    %v261 = vunpack.c.l.b16 %v81
    %v262 = vunpack.c.h.b16 %v81
    %v263 = vunpack.c.l.b16 %v82
    %v264 = vunpack.c.h.b16 %v82
    %v265 = vunpack.c.l.b16 %v83
    %v266 = vunpack.c.h.b16 %v83
    %v267 = vunpack.c.l.b16 %v84
    %v268 = vunpack.c.h.b16 %v84
    %v269 = vunpack.c.l.b16 %v85
    %v270 = vunpack.c.h.b16 %v85
    %v271 = vunpack.c.l.b16 %v86
    %v272 = vunpack.c.h.b16 %v86
    %v273 = vunpack.c.l.b16 %v87
    %v274 = vunpack.c.h.b16 %v87
    %v275 = vunpack.c.l.b16 %v88
    %v276 = vunpack.c.h.b16 %v88
    %v277 = vunpack.c.l.b16 %v89
    %v278 = vunpack.c.h.b16 %v89
    %v279 = vunpack.c.l.b16 %v90
    %v280 = vunpack.c.h.b16 %v90
    %v281 = vunpack.c.l.b16 %v91
    %v282 = vunpack.c.h.b16 %v91
    %v283 = vunpack.c.l.b16 %v92
    %v284 = vunpack.c.h.b16 %v92
    %v285 = vunpack.c.l.b16 %v93
    %v286 = vunpack.c.h.b16 %v93
    %v287 = vunpack.c.l.b16 %v94
    %v288 = vunpack.c.h.b16 %v94
    %v289 = vunpack.c.l.b16 %v95
    %v290 = vunpack.c.h.b16 %v95
    %v291 = vunpack.c.l.b16 %v96
    %v292 = vunpack.c.h.b16 %v96
    %v293 = vunpack.c.l.b16 %v97
    %v294 = vunpack.c.h.b16 %v97
    %v295 = vunpack.c.l.b16 %v98
    %v296 = vunpack.c.h.b16 %v98
    %v297 = vunpack.c.l.b16 %v99
    %v298 = vunpack.c.h.b16 %v99
    %v299 = vunpack.c.l.b16 %v100
    %v300 = vunpack.c.h.b16 %v100
    %v301 = vunpack.c.l.b16 %v101
    %v302 = vunpack.c.h.b16 %v101
    %v303 = vunpack.c.l.b16 %v102
    %v304 = vunpack.c.h.b16 %v102
    %v305 = vunpack.c.l.b16 %v103
    %v306 = vunpack.c.h.b16 %v103
    %v307 = vunpack.c.l.b16 %v104
    %v308 = vunpack.c.h.b16 %v104
    %v309 = vunpack.c.l.b16 %v105
    %v310 = vunpack.c.h.b16 %v105
    %v311 = vunpack.c.l.b16 %v106
    %v312 = vunpack.c.h.b16 %v106
    %v313 = vunpack.c.l.b16 %v107
    %v314 = vunpack.c.h.b16 %v107
    %v315 = vunpack.c.l.b16 %v108
    %v316 = vunpack.c.h.b16 %v108
    %v317 = vpack.c.b16 %v191, %v189
    %v318 = vpack.c.b16 %v192, %v190
    %v319 = vpack.c.b16 %v195, %v193
    %v320 = vpack.c.b16 %v196, %v194
    %v321 = vpack.c.b16 %v199, %v197
    %v322 = vpack.c.b16 %v200, %v198
    %v323 = vpack.c.b16 %v203, %v201
    %v324 = vpack.c.b16 %v204, %v202
    %v325 = vpack.c.b16 %v207, %v205
    %v326 = vpack.c.b16 %v208, %v206
    %v327 = vpack.c.b16 %v211, %v209
    %v328 = vpack.c.b16 %v212, %v210
    %v329 = vpack.c.b16 %v215, %v213
    %v330 = vpack.c.b16 %v216, %v214
    %v331 = vpack.c.b16 %v219, %v217
    %v332 = vpack.c.b16 %v220, %v218
    %v333 = vpack.c.b16 %v223, %v221
    %v334 = vpack.c.b16 %v224, %v222
    %v335 = vpack.c.b16 %v227, %v225
    %v336 = vpack.c.b16 %v228, %v226
    %v337 = vpack.c.b16 %v231, %v229
    %v338 = vpack.c.b16 %v232, %v230
    %v339 = vpack.c.b16 %v235, %v233
    %v340 = vpack.c.b16 %v236, %v234
    %v341 = vpack.c.b16 %v239, %v237
    %v342 = vpack.c.b16 %v240, %v238
    %v343 = vpack.c.b16 %v243, %v241
    %v344 = vpack.c.b16 %v244, %v242
    %v345 = vpack.c.b16 %v247, %v245
    %v346 = vpack.c.b16 %v248, %v246
    %v347 = vpack.c.b16 %v251, %v249
    %v348 = vpack.c.b16 %v252, %v250
    %v349 = vpack.c.b16 %v255, %v253
    %v350 = vpack.c.b16 %v256, %v254
    %v351 = vpack.c.b16 %v259, %v257
    %v352 = vpack.c.b16 %v260, %v258
    %v353 = vpack.c.b16 %v263, %v261
    %v354 = vpack.c.b16 %v264, %v262
    %v355 = vpack.c.b16 %v267, %v265
    %v356 = vpack.c.b16 %v268, %v266
    %v357 = vpack.c.b16 %v271, %v269
    %v358 = vpack.c.b16 %v272, %v270
    %v359 = vpack.c.b16 %v275, %v273
    %v360 = vpack.c.b16 %v276, %v274
    %v361 = vpack.c.b16 %v279, %v277
    %v362 = vpack.c.b16 %v280, %v278
    %v363 = vpack.c.b16 %v283, %v281
    %v364 = vpack.c.b16 %v284, %v282
    %v365 = vpack.c.b16 %v287, %v285
    %v366 = vpack.c.b16 %v288, %v286
    %v367 = vpack.c.b16 %v291, %v289
    %v368 = vpack.c.b16 %v292, %v290
    %v369 = vpack.c.b16 %v295, %v293
    %v370 = vpack.c.b16 %v296, %v294
    %v371 = vpack.c.b16 %v299, %v297
    %v372 = vpack.c.b16 %v300, %v298
    %v373 = vpack.c.b16 %v303, %v301
    %v374 = vpack.c.b16 %v304, %v302
    %v375 = vpack.c.b16 %v307, %v305
    %v376 = vpack.c.b16 %v308, %v306
    %v377 = vpack.c.b16 %v311, %v309
    %v378 = vpack.c.b16 %v312, %v310
    %v379 = vpack.c.b16 %v315, %v313
    %v380 = vpack.c.b16 %v316, %v314
    %445 = vmatpush.bf16.msra.mxu0 %v331
    %446 = vmatpush.bf16.msra.mxu0 %v329
    %447 = vmatpush.bf16.msra.mxu0 %v327
    %448 = vmatpush.bf16.msra.mxu0 %v325
    %449 = vmatpush.bf16.msra.mxu0 %v323
    %450 = vmatpush.bf16.msra.mxu0 %v321
    %451 = vmatpush.bf16.msra.mxu0 %v319
    %452 = vmatpush.bf16.msra.mxu0 %v317
    %453 = vmatmul.bf16.gmra.mxu0 %v117
    %v454 = vpop.f32.mrf.mxu0
    %v455 = vadd.f32 %v111, %v454
    %v456 = vpop.f32.mrf.mxu0
    %457 = vdwg.mxu0
    %458 = vmatpush.bf16.msra.mxu0 %v347
    %459 = vmatpush.bf16.msra.mxu0 %v345
    %460 = vmatpush.bf16.msra.mxu0 %v343
    %461 = vmatpush.bf16.msra.mxu0 %v341
    %462 = vmatpush.bf16.msra.mxu0 %v339
    %463 = vmatpush.bf16.msra.mxu0 %v337
    %464 = vmatpush.bf16.msra.mxu0 %v335
    %465 = vmatpush.bf16.msra.mxu0 %v333
    %466 = vmatmul.bf16.gmra.mxu0 %v118
    %v467 = vpop.f32.mrf.mxu0
    %v468 = vadd.f32 %v455, %v467
    %v469 = vpop.f32.mrf.mxu0
    %470 = vdwg.mxu0
    %471 = vmatpush.bf16.msra.mxu0 %v363
    %472 = vmatpush.bf16.msra.mxu0 %v361
    %473 = vmatpush.bf16.msra.mxu0 %v359
    %474 = vmatpush.bf16.msra.mxu0 %v357
    %475 = vmatpush.bf16.msra.mxu0 %v355
    %476 = vmatpush.bf16.msra.mxu0 %v353
    %477 = vmatpush.bf16.msra.mxu0 %v351
    %478 = vmatpush.bf16.msra.mxu0 %v349
    %479 = vmatmul.bf16.gmra.mxu0 %v119
    %v480 = vpop.f32.mrf.mxu0
    %v481 = vadd.f32 %v468, %v480
    %v482 = vpop.f32.mrf.mxu0
    %483 = vdwg.mxu0
    %484 = vmatpush.bf16.msra.mxu0 %v379
    %485 = vmatpush.bf16.msra.mxu0 %v377
    %486 = vmatpush.bf16.msra.mxu0 %v375
    %487 = vmatpush.bf16.msra.mxu0 %v373
    %488 = vmatpush.bf16.msra.mxu0 %v371
    %489 = vmatpush.bf16.msra.mxu0 %v369
    %490 = vmatpush.bf16.msra.mxu0 %v367
    %491 = vmatpush.bf16.msra.mxu0 %v365
    %492 = vmatmul.bf16.gmra.mxu0 %v120
    %v493 = vpop.f32.mrf.mxu0
    %v494 = vadd.f32 %v481, %v493
    %v495 = vpop.f32.mrf.mxu0
    %496 = vdwg.mxu0
    %497 = vmatpush.bf16.msra.mxu0 %v332
    %498 = vmatpush.bf16.msra.mxu0 %v330
    %499 = vmatpush.bf16.msra.mxu0 %v328
    %500 = vmatpush.bf16.msra.mxu0 %v326
    %501 = vmatpush.bf16.msra.mxu0 %v324
    %502 = vmatpush.bf16.msra.mxu0 %v322
    %503 = vmatpush.bf16.msra.mxu0 %v320
    %504 = vmatpush.bf16.msra.mxu0 %v318
    %505 = vmatmul.bf16.gmra.mxu0 %v117
    %v506 = vpop.f32.mrf.mxu0
    %v507 = vadd.f32 %v112, %v506
    %v508 = vpop.f32.mrf.mxu0
    %509 = vdwg.mxu0
    %510 = vmatpush.bf16.msra.mxu0 %v348
    %511 = vmatpush.bf16.msra.mxu0 %v346
    %512 = vmatpush.bf16.msra.mxu0 %v344
    %513 = vmatpush.bf16.msra.mxu0 %v342
    %514 = vmatpush.bf16.msra.mxu0 %v340
    %515 = vmatpush.bf16.msra.mxu0 %v338
    %516 = vmatpush.bf16.msra.mxu0 %v336
    %517 = vmatpush.bf16.msra.mxu0 %v334
    %518 = vmatmul.bf16.gmra.mxu0 %v118
    %v519 = vpop.f32.mrf.mxu0
    %v520 = vadd.f32 %v507, %v519
    %v521 = vpop.f32.mrf.mxu0
    %522 = vdwg.mxu0
    %523 = vmatpush.bf16.msra.mxu0 %v364
    %524 = vmatpush.bf16.msra.mxu0 %v362
    %525 = vmatpush.bf16.msra.mxu0 %v360
    %526 = vmatpush.bf16.msra.mxu0 %v358
    %527 = vmatpush.bf16.msra.mxu0 %v356
    %528 = vmatpush.bf16.msra.mxu0 %v354
    %529 = vmatpush.bf16.msra.mxu0 %v352
    %530 = vmatpush.bf16.msra.mxu0 %v350
    %531 = vmatmul.bf16.gmra.mxu0 %v119
    %v532 = vpop.f32.mrf.mxu0
    %v533 = vadd.f32 %v520, %v532
    %v534 = vpop.f32.mrf.mxu0
    %535 = vdwg.mxu0
    %536 = vmatpush.bf16.msra.mxu0 %v380
    %537 = vmatpush.bf16.msra.mxu0 %v378
    %538 = vmatpush.bf16.msra.mxu0 %v376
    %539 = vmatpush.bf16.msra.mxu0 %v374
    %540 = vmatpush.bf16.msra.mxu0 %v372
    %541 = vmatpush.bf16.msra.mxu0 %v370
    %542 = vmatpush.bf16.msra.mxu0 %v368
    %543 = vmatpush.bf16.msra.mxu0 %v366
    %544 = vmatmul.bf16.gmra.mxu0 %v120
    %v545 = vpop.f32.mrf.mxu0
    %v546 = vadd.f32 %v533, %v545
    %v547 = vpop.f32.mrf.mxu0
    %548 = vdwg.mxu0
    %v549 = vmax.f32 %v494, 0.0
    %v550 = vmax.f32 %v546, 0.0
    %v551 = vpack.c.bf16 %v549, %v549
    %v552 = vpack.c.bf16 %v550, %v550
    %v553 = vld [vmem:[%s3] sm:$0xf]
    %v554 = vld [vmem:[%s3 + $0x4] sm:$0xf]
    %v555 = vld [vmem:[%s3 + $0x8] sm:$0xf]
    %v556 = vld [vmem:[%s3 + $0xc] sm:$0xf]
    %v557 = vld [vmem:[%s3 + $0x10] sm:$0xf]
    %v558 = vld [vmem:[%s3 + $0x14] sm:$0xf]
    %v559 = vld [vmem:[%s3 + $0x18] sm:$0xf]
    %v560 = vld [vmem:[%s3 + $0x1c] sm:$0xf]
    %v561 = vld [vmem:[%s3 + $0x20] sm:$0xf]
    %v562 = vld [vmem:[%s3 + $0x24] sm:$0xf]
    %v563 = vld [vmem:[%s3 + $0x28] sm:$0xf]
    %v564 = vld [vmem:[%s3 + $0x2c] sm:$0xf]
    %v565 = vld [vmem:[%s3 + $0x30] sm:$0xf]
    %v566 = vld [vmem:[%s3 + $0x34] sm:$0xf]
    %v567 = vld [vmem:[%s3 + $0x38] sm:$0xf]
    %v568 = vld [vmem:[%s3 + $0x3c] sm:$0xf]
    %v569 = vld [vmem:[%s3 + $0x40] sm:$0xf]
    %v570 = vld [vmem:[%s3 + $0x44] sm:$0xf]
    %v571 = vld [vmem:[%s3 + $0x48] sm:$0xf]
    %v572 = vld [vmem:[%s3 + $0x4c] sm:$0xf]
    %v573 = vld [vmem:[%s3 + $0x50] sm:$0xf]
    %v574 = vld [vmem:[%s3 + $0x54] sm:$0xf]
    %v575 = vld [vmem:[%s3 + $0x58] sm:$0xf]
    %v576 = vld [vmem:[%s3 + $0x5c] sm:$0xf]
    %v577 = vld [vmem:[%s3 + $0x60] sm:$0xf]
    %v578 = vld [vmem:[%s3 + $0x64] sm:$0xf]
    %v579 = vld [vmem:[%s3 + $0x68] sm:$0xf]
    %v580 = vld [vmem:[%s3 + $0x6c] sm:$0xf]
    %v581 = vld [vmem:[%s3 + $0x70] sm:$0xf]
    %v582 = vld [vmem:[%s3 + $0x74] sm:$0xf]
    %v583 = vld [vmem:[%s3 + $0x78] sm:$0xf]
    %v584 = vld [vmem:[%s3 + $0x7c] sm:$0xf]
    %v585 = vld [vmem:[%s4] sm:$0x1]
    %v587 = vperm.slane %v585, 0
    %v621 = vunpack.c.l.b16 %v553
    %v622 = vunpack.c.l.b16 %v554
    %v623 = vunpack.c.l.b16 %v555
    %v624 = vunpack.c.l.b16 %v556
    %v625 = vunpack.c.l.b16 %v557
    %v626 = vunpack.c.l.b16 %v558
    %v627 = vunpack.c.l.b16 %v559
    %v628 = vunpack.c.l.b16 %v560
    %v629 = vunpack.c.l.b16 %v561
    %v630 = vunpack.c.l.b16 %v562
    %v631 = vunpack.c.l.b16 %v563
    %v632 = vunpack.c.l.b16 %v564
    %v633 = vunpack.c.l.b16 %v565
    %v634 = vunpack.c.l.b16 %v566
    %v635 = vunpack.c.l.b16 %v567
    %v636 = vunpack.c.l.b16 %v568
    %v637 = vunpack.c.l.b16 %v569
    %v638 = vunpack.c.l.b16 %v570
    %v639 = vunpack.c.l.b16 %v571
    %v640 = vunpack.c.l.b16 %v572
    %v641 = vunpack.c.l.b16 %v573
    %v642 = vunpack.c.l.b16 %v574
    %v643 = vunpack.c.l.b16 %v575
    %v644 = vunpack.c.l.b16 %v576
    %v645 = vunpack.c.l.b16 %v577
    %v646 = vunpack.c.l.b16 %v578
    %v647 = vunpack.c.l.b16 %v579
    %v648 = vunpack.c.l.b16 %v580
    %v649 = vunpack.c.l.b16 %v581
    %v650 = vunpack.c.l.b16 %v582
    %v651 = vunpack.c.l.b16 %v583
    %v652 = vunpack.c.l.b16 %v584
    %v653 = vpack.c.b16 %v622, %v621
    %v654 = vpack.c.b16 %v624, %v623
    %v655 = vpack.c.b16 %v626, %v625
    %v656 = vpack.c.b16 %v628, %v627
    %v657 = vpack.c.b16 %v630, %v629
    %v658 = vpack.c.b16 %v632, %v631
    %v659 = vpack.c.b16 %v634, %v633
    %v660 = vpack.c.b16 %v636, %v635
    %v661 = vpack.c.b16 %v638, %v637
    %v662 = vpack.c.b16 %v640, %v639
    %v663 = vpack.c.b16 %v642, %v641
    %v664 = vpack.c.b16 %v644, %v643
    %v665 = vpack.c.b16 %v646, %v645
    %v666 = vpack.c.b16 %v648, %v647
    %v667 = vpack.c.b16 %v650, %v649
    %v668 = vpack.c.b16 %v652, %v651
    %685 = vmatpush.bf16.msra.mxu0 %v660
    %686 = vmatpush.bf16.msra.mxu0 %v659
    %687 = vmatpush.bf16.msra.mxu0 %v658
    %688 = vmatpush.bf16.msra.mxu0 %v657
    %689 = vmatpush.bf16.msra.mxu0 %v656
    %690 = vmatpush.bf16.msra.mxu0 %v655
    %691 = vmatpush.bf16.msra.mxu0 %v654
    %692 = vmatpush.bf16.msra.mxu0 %v653
    %693 = vmatmul.bf16.gmra.mxu0 %v551
    %v694 = vpop.f32.mrf.mxu0
    %v695 = vadd.f32 %v587, %v694
    %v696 = vpop.f32.mrf.mxu0
    %697 = vdwg.mxu0
    %698 = vmatpush.bf16.msra.mxu0 %v668
    %699 = vmatpush.bf16.msra.mxu0 %v667
    %700 = vmatpush.bf16.msra.mxu0 %v666
    %701 = vmatpush.bf16.msra.mxu0 %v665
    %702 = vmatpush.bf16.msra.mxu0 %v664
    %703 = vmatpush.bf16.msra.mxu0 %v663
    %704 = vmatpush.bf16.msra.mxu0 %v662
    %705 = vmatpush.bf16.msra.mxu0 %v661
    %706 = vmatmul.bf16.gmra.mxu0 %v552
    %v707 = vpop.f32.mrf.mxu0
    %v708 = vadd.f32 %v695, %v707
    %v709 = vpop.f32.mrf.mxu0
    %710 = vdwg.mxu0
    %v711 = vmax.f32 %v708, 0.0
    %v712 = vpack.c.bf16 %v711, %v711
    %v713 = vld [vmem:[%s5] sm:$0xf]
    %v714 = vld [vmem:[%s5 + $0x4] sm:$0xf]
    %v715 = vld [vmem:[%s5 + $0x8] sm:$0xf]
    %v716 = vld [vmem:[%s5 + $0xc] sm:$0xf]
    %v717 = vld [vmem:[%s5 + $0x10] sm:$0xf]
    %v718 = vld [vmem:[%s5 + $0x14] sm:$0xf]
    %v719 = vld [vmem:[%s5 + $0x18] sm:$0xf]
    %v720 = vld [vmem:[%s5 + $0x1c] sm:$0xf]
    %v721 = vld [vmem:[%s6] sm:$0x1]
    %v723 = vperm.slane %v721, 0
    %v733 = vunpack.c.l.b16 %v713
    %v734 = vunpack.c.l.b16 %v714
    %v735 = vunpack.c.l.b16 %v715
    %v736 = vunpack.c.l.b16 %v716
    %v737 = vunpack.c.l.b16 %v717
    %v738 = vunpack.c.l.b16 %v718
    %v739 = vunpack.c.l.b16 %v719
    %v740 = vunpack.c.l.b16 %v720
    %v741 = vpack.c.b16 %v734, %v733
    %v742 = vpack.c.b16 %v736, %v735
    %v743 = vpack.c.b16 %v738, %v737
    %v744 = vpack.c.b16 %v740, %v739
    %vm749 = vcmask 523264
    %v751 = vsel %vm749, %v712, 0
    %753 = vmatpush.bf16.msra.mxu0 0
    %754 = vmatpush.bf16.msra.mxu0 0
    %755 = vmatpush.bf16.msra.mxu0 0
    %756 = vmatpush.bf16.msra.mxu0 0
    %757 = vmatpush.bf16.msra.mxu0 %v744
    %758 = vmatpush.bf16.msra.mxu0 %v743
    %759 = vmatpush.bf16.msra.mxu0 %v742
    %760 = vmatpush.bf16.msra.mxu0 %v741
    %761 = vmatmul.bf16.gmra.mxu0 %v751
    %v762 = vpop.f32.mrf.mxu0
    %v763 = vadd.f32 %v723, %v762
    %v764 = vpop.f32.mrf.mxu0
    %765 = vdwg.mxu0
    %vm766 = vcmask 41984
    %767 = vst.msk [vmem:[#allocation5] sm:$0x3] %vm766, %v763
    // Predicated region
    $region34: #{tpu_custom_call.1} parent=1 // pred_check
      _
    $region35: #{tpu_custom_call.1} parent=1 // pred_check_branch
      %769 = sbr.rel (0) target = $region37
    $region36: #{tpu_custom_call.1} parent=1 // pred_region
      %771 = vsyncadd [#allocation4], 0
      %s773 = sshll.u32 [#allocation5], 4
      %s774 = int_to_ptr.vmem [resolvable:$true] %s773
      %s775 = sshll.u32 %s7, 4
      %s776 = int_to_ptr.hbm [resolvable:$true] %s775
      %778 = dma.vmem_to_hbm [thread:$0]  %s774, 32, %s776, [#allocation4]
    $region37: #{tpu_custom_call.1} parent=1 // pred_fallthru
      _
    // Predicated region
    $region38: #{tpu_custom_call.1} parent=1 // pred_check
      _
    $region39: #{tpu_custom_call.1} parent=1 // pred_check_branch
      %780 = sbr.rel (0) target = $region41
    $region40: #{tpu_custom_call.1} parent=1 // pred_region
      %782 = dma.done [#allocation4], 32
    $region41: #{tpu_custom_call.1} parent=1 // pred_fallthru
      _
    %783 = vsyncpa [#allocation3], 1
    %784 = vsyncpa [#allocation4], 1

</llo_original>
